<compile_context>
chip_gen: v6e
topology: v6e:2x2x1
jax: 0.10.0
libtpu: 0.0.40
codegen_flags: <defaults>
</compile_context>

<pallas_src>
import functools

import jax
import jax.numpy as jnp
from jax.experimental import pallas as pl
from jax.experimental.pallas import tpu as pltpu


def _round_up(v, m):
    return ((v + m - 1) // m) * m


def _mlp_kernel(x_ref, w_in_ref, w_mid_ref, w_out_ref, b_hid_ref, b_out_ref,
                o_ref, *, compute_dtype):
    """Full 9-layer MLP forward for one (tile_b, n_in_p) batch tile, all in VMEM."""
    b_hid = b_hid_ref[...]                       # (8, H) f32, loaded once
    h = x_ref[...].astype(compute_dtype)         # (tile_b, n_in_p)

    # layer 1: (tile_b, n_in_p) @ (n_in_p, H), f32 accumulation on the MXU
    y = jnp.dot(h, w_in_ref[...], preferred_element_type=jnp.float32)
    y = jnp.maximum(y + b_hid[0:1, :], 0.0)

    # layers 2..8: seven (H, H) matmuls, unrolled at trace time
    for i in range(7):
        y = jnp.dot(y.astype(compute_dtype), w_mid_ref[i],
                    preferred_element_type=jnp.float32)
        y = jnp.maximum(y + b_hid[i + 1:i + 2, :], 0.0)

    # layer 9: (tile_b, H) @ (H, n_out_p), no activation
    y = jnp.dot(y.astype(compute_dtype), w_out_ref[...],
                preferred_element_type=jnp.float32)
    o_ref[...] = (y + b_out_ref[...]).astype(o_ref.dtype)


def mlp_forward(x, params, *, tile_b=512, compute_dtype=jnp.bfloat16):
    """x: (B, n_in) float.  params: list of 9 (W_t, b) with W_t (in, out), b (1, out)."""
    assert len(params) == 9
    B, n_in = x.shape
    H = params[0][0].shape[1]          # hidden width (128)
    n_out = params[-1][0].shape[1]

    # Lane-dense feature padding (multiples of 128).
    n_in_p = _round_up(max(n_in, 128), 128)
    n_out_p = _round_up(max(n_out, 128), 128)

    # Batch tile: large (MXU-friendly), multiple of 8, and >=2 grid steps when possible
    # so the "parallel" batch axis can shard across v7x's two TensorCores.
    tile_b = max(8, _round_up(min(tile_b, B), 8))
    if _round_up(B, tile_b) // tile_b < 2 and B > 8:
        tile_b = max(8, _round_up(-(-B // 2), 8))
    B_p = _round_up(B, tile_b)

    # Zero-pad input rows/cols (sliced off at the end).
    x_p = jnp.zeros((B_p, n_in_p), jnp.float32).at[:B, :n_in].set(
        x.astype(jnp.float32))

    # Stack / pad parameters into 5 operands.
    w1, _ = params[0]
    w9, b9 = params[-1]
    w_in = jnp.zeros((n_in_p, H), jnp.float32).at[:n_in, :].set(w1)
    w_in = w_in.astype(compute_dtype)
    w_mid = jnp.stack([params[i][0] for i in range(1, 8)]).astype(compute_dtype)  # (7,H,H)
    w_out = jnp.zeros((H, n_out_p), jnp.float32).at[:, :n_out].set(w9)
    w_out = w_out.astype(compute_dtype)
    b_hid = jnp.concatenate([params[i][1] for i in range(8)], axis=0)             # (8,H)
    b_hid = b_hid.astype(jnp.float32)
    b_out = jnp.zeros((1, n_out_p), jnp.float32).at[:, :n_out].set(b9)

    in_specs = [
        pl.BlockSpec((tile_b, n_in_p), lambda i: (i, 0)),     # x: batch-tiled
        pl.BlockSpec((n_in_p, H), lambda i: (0, 0)),          # w_in: resident
        pl.BlockSpec((7, H, H), lambda i: (0, 0, 0)),         # w_mid: resident
        pl.BlockSpec((H, n_out_p), lambda i: (0, 0)),         # w_out: resident
        pl.BlockSpec((8, H), lambda i: (0, 0)),               # hidden biases
        pl.BlockSpec((1, n_out_p), lambda i: (0, 0)),         # output bias
    ]
    out_spec = pl.BlockSpec((tile_b, n_out_p), lambda i: (i, 0))   # lane-dense output

    def _nbytes(a):
        return int(a.size) * a.dtype.itemsize

    flops = 2 * B_p * (n_in_p * H + 7 * H * H + H * n_out_p)
    bytes_accessed = (_nbytes(x_p) + _nbytes(w_in) + _nbytes(w_mid) +
                      _nbytes(w_out) + _nbytes(b_hid) + _nbytes(b_out) +
                      B_p * n_out_p * 4)
    param_bytes = (_nbytes(w_in) + _nbytes(w_mid) + _nbytes(w_out) +
                   _nbytes(b_hid) + _nbytes(b_out))
    act_bytes = tile_b * (n_in_p + n_out_p) * 4
    vmem_limit = int(min(max(2 * (param_bytes + act_bytes) + (8 << 20), 32 << 20),
                         64 << 20))

    out_p = pl.pallas_call(
        functools.partial(_mlp_kernel, compute_dtype=compute_dtype),
        out_shape=jax.ShapeDtypeStruct((B_p, n_out_p), jnp.float32),
        grid_spec=pltpu.PrefetchScalarGridSpec(
            num_scalar_prefetch=0,
            grid=(B_p // tile_b,),
            in_specs=in_specs,
            out_specs=out_spec,
        ),
        compiler_params=pltpu.CompilerParams(
            dimension_semantics=("parallel",),
            vmem_limit_bytes=vmem_limit,
        ),
        cost_estimate=pl.CostEstimate(
            flops=flops, transcendentals=0, bytes_accessed=bytes_accessed),
    )(x_p, w_in, w_mid, w_out, b_hid, b_out)

    return out_p[:B, :n_out]


def init_params(key, n_in, n_out, neurons=128):
    """Deterministic init mimicking nn.Linear default (uniform +/- 1/sqrt(fan_in)).
    Returns list of (W_transposed (in,out), bias (1,out))."""
    dims = [(n_in, neurons)] + [(neurons, neurons)] * 7 + [(neurons, n_out)]
    params = []
    for (fan_in, fan_out) in dims:
        key, kw, kb = jax.random.split(key, 3)
        bound = 1.0 / jnp.sqrt(jnp.float32(fan_in))
        w_t = jax.random.uniform(kw, (fan_in, fan_out), jnp.float32, -bound, bound)
        b = jax.random.uniform(kb, (1, fan_out), jnp.float32, -bound, bound)
        params.append((w_t, b))
    return params


def reference_forward(x, params, compute_dtype=jnp.float32):
    h = x.astype(jnp.float32)
    for i, (w, b) in enumerate(params):
        y = jnp.dot(h.astype(compute_dtype), w.astype(compute_dtype),
                    preferred_element_type=jnp.float32) + b
        h = jnp.maximum(y, 0.0) if i < len(params) - 1 else y
    return h


if __name__ == "__main__":
    key = jax.random.PRNGKey(0)
    n_in, n_out, neurons = 32, 8, 128
    B = 16

    kx, kp = jax.random.split(key)
    x = jax.random.normal(kx, (B, n_in), jnp.float32)
    params = init_params(kp, n_in, n_out, neurons)

    # Exact-f32 path: tight check vs pure-JAX reference.
    out_f32 = jax.block_until_ready(
        mlp_forward(x, params, tile_b=256, compute_dtype=jnp.float32))
    ref_f32 = reference_forward(x, params, compute_dtype=jnp.float32)
    assert out_f32.shape == (B, n_out)
    assert jnp.allclose(out_f32, ref_f32, atol=1e-4, rtol=1e-4), "f32 mismatch vs reference"

    # bf16-operand MXU path (f32 accumulation): check vs a matching bf16 reference.
    out_bf16 = jax.block_until_ready(
        mlp_forward(x, params, tile_b=256, compute_dtype=jnp.bfloat16))
    ref_bf16 = reference_forward(x, params, compute_dtype=jnp.bfloat16)
    assert out_bf16.shape == (B, n_out)
    assert jnp.allclose(out_bf16, ref_bf16, atol=5e-2, rtol=5e-2), "bf16 mismatch vs reference"

    print("KERNEL_OK")
</pallas_src>

<mosaic_0001>
module attributes {stable_mosaic.version = 11 : i64} {
  func.func @_mlp_kernel(%arg0: i32, %arg1: memref<8x128xf32, #tpu.memory_space<vmem>>, %arg2: memref<128x128xf32, #tpu.memory_space<vmem>>, %arg3: memref<7x128x128xf32, #tpu.memory_space<vmem>>, %arg4: memref<128x128xf32, #tpu.memory_space<vmem>>, %arg5: memref<8x128xf32, #tpu.memory_space<vmem>>, %arg6: memref<1x128xf32, #tpu.memory_space<vmem>>, %arg7: memref<8x128xf32, #tpu.memory_space<vmem>>) attributes {dimension_semantics = [#tpu.dimension_semantics<parallel>], iteration_bounds = array<i64: 2>, scalar_prefetch = 0 : i64, scratch_operands = 0 : i64, tpu.core_type = #tpu.core_type<tc>, window_params = [{transform_indices = @transform_0, window_bounds = array<i64: 8, 128>}, {pipeline_mode = #tpu.pipeline_mode<synchronous>, transform_indices = @transform_1, window_bounds = array<i64: 128, 128>}, {pipeline_mode = #tpu.pipeline_mode<synchronous>, transform_indices = @transform_2, window_bounds = array<i64: 7, 128, 128>}, {pipeline_mode = #tpu.pipeline_mode<synchronous>, transform_indices = @transform_3, window_bounds = array<i64: 128, 128>}, {pipeline_mode = #tpu.pipeline_mode<synchronous>, transform_indices = @transform_4, window_bounds = array<i64: 8, 128>}, {pipeline_mode = #tpu.pipeline_mode<synchronous>, transform_indices = @transform_5, window_bounds = array<i64: 1, 128>}, {transform_indices = @transform_6, window_bounds = array<i64: 8, 128>}]} {
    %c0 = arith.constant 0 : index
    %c0_0 = arith.constant 0 : index
    %0 = vector.load %arg5[%c0, %c0_0] : memref<8x128xf32, #tpu.memory_space<vmem>>, vector<8x128xf32>
    %c0_1 = arith.constant 0 : index
    %c0_2 = arith.constant 0 : index
    %1 = vector.load %arg1[%c0_1, %c0_2] : memref<8x128xf32, #tpu.memory_space<vmem>>, vector<8x128xf32>
    %c0_3 = arith.constant 0 : index
    %c0_4 = arith.constant 0 : index
    %2 = vector.load %arg2[%c0_3, %c0_4] : memref<128x128xf32, #tpu.memory_space<vmem>>, vector<128x128xf32>
    %cst = arith.constant dense<0.000000e+00> : vector<8x128xf32>
    %3 = tpu.matmul %1, %2, %cst {dimension_numbers = #tpu.dot_dimension_numbers<[1], [0], [0], [1], [0, 0, 1, 1], [], []>} : vector<8x128xf32>, vector<128x128xf32>, vector<8x128xf32> -> vector<8x128xf32>
    %4 = vector.extract_strided_slice %0 {offsets = [0, 0], sizes = [1, 128], strides = [1, 1]} : vector<8x128xf32> to vector<1x128xf32>
    %5 = vector.broadcast %4 : vector<1x128xf32> to vector<8x128xf32>
    %6 = arith.addf %3, %5 : vector<8x128xf32>
    %cst_5 = arith.constant 0.000000e+00 : f32
    %7 = vector.broadcast %cst_5 : f32 to vector<8x128xf32>
    %8 = arith.maximumf %6, %7 : vector<8x128xf32>
    %c0_6 = arith.constant 0 : index
    %c0_7 = arith.constant 0 : index
    %c0_8 = arith.constant 0 : index
    %9 = vector.load %arg3[%c0_6, %c0_7, %c0_8] : memref<7x128x128xf32, #tpu.memory_space<vmem>>, vector<1x128x128xf32>
    %10 = vector.shape_cast %9 : vector<1x128x128xf32> to vector<128x128xf32>
    %cst_9 = arith.constant dense<0.000000e+00> : vector<8x128xf32>
    %11 = tpu.matmul %8, %10, %cst_9 {dimension_numbers = #tpu.dot_dimension_numbers<[1], [0], [0], [1], [0, 0, 1, 1], [], []>} : vector<8x128xf32>, vector<128x128xf32>, vector<8x128xf32> -> vector<8x128xf32>
    %12 = vector.extract_strided_slice %0 {offsets = [1, 0], sizes = [1, 128], strides = [1, 1]} : vector<8x128xf32> to vector<1x128xf32>
    %13 = vector.broadcast %12 : vector<1x128xf32> to vector<8x128xf32>
    %14 = arith.addf %11, %13 : vector<8x128xf32>
    %cst_10 = arith.constant 0.000000e+00 : f32
    %15 = vector.broadcast %cst_10 : f32 to vector<8x128xf32>
    %16 = arith.maximumf %14, %15 : vector<8x128xf32>
    %c1 = arith.constant 1 : index
    %c0_11 = arith.constant 0 : index
    %c0_12 = arith.constant 0 : index
    %17 = vector.load %arg3[%c1, %c0_11, %c0_12] : memref<7x128x128xf32, #tpu.memory_space<vmem>>, vector<1x128x128xf32>
    %18 = vector.shape_cast %17 : vector<1x128x128xf32> to vector<128x128xf32>
    %cst_13 = arith.constant dense<0.000000e+00> : vector<8x128xf32>
    %19 = tpu.matmul %16, %18, %cst_13 {dimension_numbers = #tpu.dot_dimension_numbers<[1], [0], [0], [1], [0, 0, 1, 1], [], []>} : vector<8x128xf32>, vector<128x128xf32>, vector<8x128xf32> -> vector<8x128xf32>
    %20 = vector.extract_strided_slice %0 {offsets = [2, 0], sizes = [1, 128], strides = [1, 1]} : vector<8x128xf32> to vector<1x128xf32>
    %21 = vector.broadcast %20 : vector<1x128xf32> to vector<8x128xf32>
    %22 = arith.addf %19, %21 : vector<8x128xf32>
    %cst_14 = arith.constant 0.000000e+00 : f32
    %23 = vector.broadcast %cst_14 : f32 to vector<8x128xf32>
    %24 = arith.maximumf %22, %23 : vector<8x128xf32>
    %c2 = arith.constant 2 : index
    %c0_15 = arith.constant 0 : index
    %c0_16 = arith.constant 0 : index
    %25 = vector.load %arg3[%c2, %c0_15, %c0_16] : memref<7x128x128xf32, #tpu.memory_space<vmem>>, vector<1x128x128xf32>
    %26 = vector.shape_cast %25 : vector<1x128x128xf32> to vector<128x128xf32>
    %cst_17 = arith.constant dense<0.000000e+00> : vector<8x128xf32>
    %27 = tpu.matmul %24, %26, %cst_17 {dimension_numbers = #tpu.dot_dimension_numbers<[1], [0], [0], [1], [0, 0, 1, 1], [], []>} : vector<8x128xf32>, vector<128x128xf32>, vector<8x128xf32> -> vector<8x128xf32>
    %28 = vector.extract_strided_slice %0 {offsets = [3, 0], sizes = [1, 128], strides = [1, 1]} : vector<8x128xf32> to vector<1x128xf32>
    %29 = vector.broadcast %28 : vector<1x128xf32> to vector<8x128xf32>
    %30 = arith.addf %27, %29 : vector<8x128xf32>
    %cst_18 = arith.constant 0.000000e+00 : f32
    %31 = vector.broadcast %cst_18 : f32 to vector<8x128xf32>
    %32 = arith.maximumf %30, %31 : vector<8x128xf32>
    %c3 = arith.constant 3 : index
    %c0_19 = arith.constant 0 : index
    %c0_20 = arith.constant 0 : index
    %33 = vector.load %arg3[%c3, %c0_19, %c0_20] : memref<7x128x128xf32, #tpu.memory_space<vmem>>, vector<1x128x128xf32>
    %34 = vector.shape_cast %33 : vector<1x128x128xf32> to vector<128x128xf32>
    %cst_21 = arith.constant dense<0.000000e+00> : vector<8x128xf32>
    %35 = tpu.matmul %32, %34, %cst_21 {dimension_numbers = #tpu.dot_dimension_numbers<[1], [0], [0], [1], [0, 0, 1, 1], [], []>} : vector<8x128xf32>, vector<128x128xf32>, vector<8x128xf32> -> vector<8x128xf32>
    %36 = vector.extract_strided_slice %0 {offsets = [4, 0], sizes = [1, 128], strides = [1, 1]} : vector<8x128xf32> to vector<1x128xf32>
    %37 = vector.broadcast %36 : vector<1x128xf32> to vector<8x128xf32>
    %38 = arith.addf %35, %37 : vector<8x128xf32>
    %cst_22 = arith.constant 0.000000e+00 : f32
    %39 = vector.broadcast %cst_22 : f32 to vector<8x128xf32>
    %40 = arith.maximumf %38, %39 : vector<8x128xf32>
    %c4 = arith.constant 4 : index
    %c0_23 = arith.constant 0 : index
    %c0_24 = arith.constant 0 : index
    %41 = vector.load %arg3[%c4, %c0_23, %c0_24] : memref<7x128x128xf32, #tpu.memory_space<vmem>>, vector<1x128x128xf32>
    %42 = vector.shape_cast %41 : vector<1x128x128xf32> to vector<128x128xf32>
    %cst_25 = arith.constant dense<0.000000e+00> : vector<8x128xf32>
    %43 = tpu.matmul %40, %42, %cst_25 {dimension_numbers = #tpu.dot_dimension_numbers<[1], [0], [0], [1], [0, 0, 1, 1], [], []>} : vector<8x128xf32>, vector<128x128xf32>, vector<8x128xf32> -> vector<8x128xf32>
    %44 = vector.extract_strided_slice %0 {offsets = [5, 0], sizes = [1, 128], strides = [1, 1]} : vector<8x128xf32> to vector<1x128xf32>
    %45 = vector.broadcast %44 : vector<1x128xf32> to vector<8x128xf32>
    %46 = arith.addf %43, %45 : vector<8x128xf32>
    %cst_26 = arith.constant 0.000000e+00 : f32
    %47 = vector.broadcast %cst_26 : f32 to vector<8x128xf32>
    %48 = arith.maximumf %46, %47 : vector<8x128xf32>
    %c5 = arith.constant 5 : index
    %c0_27 = arith.constant 0 : index
    %c0_28 = arith.constant 0 : index
    %49 = vector.load %arg3[%c5, %c0_27, %c0_28] : memref<7x128x128xf32, #tpu.memory_space<vmem>>, vector<1x128x128xf32>
    %50 = vector.shape_cast %49 : vector<1x128x128xf32> to vector<128x128xf32>
    %cst_29 = arith.constant dense<0.000000e+00> : vector<8x128xf32>
    %51 = tpu.matmul %48, %50, %cst_29 {dimension_numbers = #tpu.dot_dimension_numbers<[1], [0], [0], [1], [0, 0, 1, 1], [], []>} : vector<8x128xf32>, vector<128x128xf32>, vector<8x128xf32> -> vector<8x128xf32>
    %52 = vector.extract_strided_slice %0 {offsets = [6, 0], sizes = [1, 128], strides = [1, 1]} : vector<8x128xf32> to vector<1x128xf32>
    %53 = vector.broadcast %52 : vector<1x128xf32> to vector<8x128xf32>
    %54 = arith.addf %51, %53 : vector<8x128xf32>
    %cst_30 = arith.constant 0.000000e+00 : f32
    %55 = vector.broadcast %cst_30 : f32 to vector<8x128xf32>
    %56 = arith.maximumf %54, %55 : vector<8x128xf32>
    %c6 = arith.constant 6 : index
    %c0_31 = arith.constant 0 : index
    %c0_32 = arith.constant 0 : index
    %57 = vector.load %arg3[%c6, %c0_31, %c0_32] : memref<7x128x128xf32, #tpu.memory_space<vmem>>, vector<1x128x128xf32>
    %58 = vector.shape_cast %57 : vector<1x128x128xf32> to vector<128x128xf32>
    %cst_33 = arith.constant dense<0.000000e+00> : vector<8x128xf32>
    %59 = tpu.matmul %56, %58, %cst_33 {dimension_numbers = #tpu.dot_dimension_numbers<[1], [0], [0], [1], [0, 0, 1, 1], [], []>} : vector<8x128xf32>, vector<128x128xf32>, vector<8x128xf32> -> vector<8x128xf32>
    %60 = vector.extract_strided_slice %0 {offsets = [7, 0], sizes = [1, 128], strides = [1, 1]} : vector<8x128xf32> to vector<1x128xf32>
    %61 = vector.broadcast %60 : vector<1x128xf32> to vector<8x128xf32>
    %62 = arith.addf %59, %61 : vector<8x128xf32>
    %cst_34 = arith.constant 0.000000e+00 : f32
    %63 = vector.broadcast %cst_34 : f32 to vector<8x128xf32>
    %64 = arith.maximumf %62, %63 : vector<8x128xf32>
    %c0_35 = arith.constant 0 : index
    %c0_36 = arith.constant 0 : index
    %65 = vector.load %arg4[%c0_35, %c0_36] : memref<128x128xf32, #tpu.memory_space<vmem>>, vector<128x128xf32>
    %cst_37 = arith.constant dense<0.000000e+00> : vector<8x128xf32>
    %66 = tpu.matmul %64, %65, %cst_37 {dimension_numbers = #tpu.dot_dimension_numbers<[1], [0], [0], [1], [0, 0, 1, 1], [], []>} : vector<8x128xf32>, vector<128x128xf32>, vector<8x128xf32> -> vector<8x128xf32>
    %c0_38 = arith.constant 0 : index
    %c0_39 = arith.constant 0 : index
    %67 = vector.load %arg6[%c0_38, %c0_39] : memref<1x128xf32, #tpu.memory_space<vmem>>, vector<1x128xf32>
    %68 = vector.broadcast %67 : vector<1x128xf32> to vector<8x128xf32>
    %69 = arith.addf %66, %68 : vector<8x128xf32>
    %c0_40 = arith.constant 0 : index
    %c0_41 = arith.constant 0 : index
    %70 = vector.load %arg7[%c0_40, %c0_41] : memref<8x128xf32, #tpu.memory_space<vmem>>, vector<8x128xf32>
    tpu.vector_store %arg7[%c0_40, %c0_41], %69 {strides = array<i32>} : memref<8x128xf32, #tpu.memory_space<vmem>>, vector<8x128xf32>,
    return
  }
  func.func @transform_0(%arg0: i32) -> (i32, i32) {
    %c0_i32 = arith.constant 0 : i32
    %c0_i32_0 = arith.constant 0 : i32
    return %arg0, %c0_i32 : i32, i32
  }
  func.func @transform_1(%arg0: i32) -> (i32, i32) {
    %c0_i32 = arith.constant 0 : i32
    %c0_i32_0 = arith.constant 0 : i32
    %c0_i32_1 = arith.constant 0 : i32
    return %c0_i32, %c0_i32_0 : i32, i32
  }
  func.func @transform_2(%arg0: i32) -> (i32, i32, i32) {
    %c0_i32 = arith.constant 0 : i32
    %c0_i32_0 = arith.constant 0 : i32
    %c0_i32_1 = arith.constant 0 : i32
    %c0_i32_2 = arith.constant 0 : i32
    return %c0_i32, %c0_i32_0, %c0_i32_1 : i32, i32, i32
  }
  func.func @transform_3(%arg0: i32) -> (i32, i32) {
    %c0_i32 = arith.constant 0 : i32
    %c0_i32_0 = arith.constant 0 : i32
    %c0_i32_1 = arith.constant 0 : i32
    return %c0_i32, %c0_i32_0 : i32, i32
  }
  func.func @transform_4(%arg0: i32) -> (i32, i32) {
    %c0_i32 = arith.constant 0 : i32
    %c0_i32_0 = arith.constant 0 : i32
    %c0_i32_1 = arith.constant 0 : i32
    return %c0_i32, %c0_i32_0 : i32, i32
  }
  func.func @transform_5(%arg0: i32) -> (i32, i32) {
    %c0_i32 = arith.constant 0 : i32
    %c0_i32_0 = arith.constant 0 : i32
    %c0_i32_1 = arith.constant 0 : i32
    return %c0_i32, %c0_i32_0 : i32, i32
  }
  func.func @transform_6(%arg0: i32) -> (i32, i32) {
    %c0_i32 = arith.constant 0 : i32
    %c0_i32_0 = arith.constant 0 : i32
    return %arg0, %c0_i32 : i32, i32
  }
}

</mosaic_0001>

<llo_original>
// kernel: tpu_custom_call.1
$region0: #{tpu_custom_call.1}
  #allocation0 [shape = 'u32[]', space=smem, size = 0x4, offset = 0x4, fixed_abs, tag = 'smem constant byte address 0x4 - core index']
  #allocation1 [shape = 'u32[144,128]{1,0:T(1,128)}', space=vmem, size = 0x12000, scoped, tag = 'internal scratch']
  %s0 = inlined_call_operand.hbm [shape: f32[16,128], index: 0, kind: input, shape index: {}]
  %s1 = inlined_call_operand.hbm [shape: f32[128,128], index: 1, kind: input, shape index: {}]
  %s2 = inlined_call_operand.hbm [shape: f32[7,128,128], index: 2, kind: input, shape index: {}]
  %s3 = inlined_call_operand.hbm [shape: f32[128,128], index: 3, kind: input, shape index: {}]
  %s4 = inlined_call_operand.hbm [shape: f32[8,128], index: 4, kind: input, shape index: {}]
  %s5 = inlined_call_operand.vmem [shape: f32[1,128], index: 5, kind: input, shape index: {}]
  %s6 = inlined_call_operand.hbm [shape: f32[16,128], index: 6, kind: output, shape index: {}]
  %s7 = sld [smem:[#allocation0]]
  $region77: #{tpu_custom_call.1} parent=0
    _
  %s9 = ssub.s32 1, %s7
  %s10 = scalar_select 0, %s9, %s7
  $region1: #{tpu_custom_call.1} parent=0
    #allocation2 [shape = 'u8[8192]{0}', space=vmem, size = 0x2000, scoped, tag = 'input window, operand 0']
    #allocation3 [shape = 's32[2]{0}', space=sflag, size = 0x8, scoped, tag = 'scoped memory for tpu_custom_call.1']
    #allocation4 [shape = 's32[2]{0}', space=sflag, size = 0x8, scoped, tag = 'scoped memory for tpu_custom_call.1']
    #allocation5 [shape = 'u8[65536]{0}', space=vmem, size = 0x10000, scoped, tag = 'input window, operand 1, single buffered']
    #allocation6 [shape = 's32[1]{0}', space=sflag, size = 0x4, scoped, tag = 'scoped memory for tpu_custom_call.1']
    #allocation7 [shape = 'u8[458752]{0}', space=vmem, size = 0x70000, scoped, tag = 'input window, operand 2, single buffered']
    #allocation8 [shape = 'u8[65536]{0}', space=vmem, size = 0x10000, scoped, tag = 'input window, operand 3, single buffered']
    #allocation9 [shape = 's32[1]{0}', space=sflag, size = 0x4, scoped, tag = 'scoped memory for tpu_custom_call.1']
    #allocation10 [shape = 'u8[4096]{0}', space=vmem, size = 0x1000, scoped, tag = 'input window, operand 4, single buffered']
    #allocation11 [shape = 'u8[8192]{0}', space=vmem, size = 0x2000, scoped, tag = 'output window, operand 0']
    %11 = vsyncpa [#allocation3], 0
    %s12 = scalar_lea.sflag [#allocation3], 1
    %13 = vsyncpa %s12, 0
    %14 = vsyncpa [#allocation6], 0
    %15 = vsyncpa [#allocation9], 0
    %16 = vsyncpa [#allocation4], 0
    %s17 = scalar_lea.sflag [#allocation4], 1
    %18 = vsyncpa %s17, 0
    loop: start=0, step=1, limit=4
    $region2: #{tpu_custom_call.1} parent=1 // loop_pre_header
      _
    $region3: #{tpu_custom_call.1} parent=1 // loop_header
      %s20 = sphi 0, %s24
      %p21 = scmp.ge.s32.totalorder %s20, 4
      %s30 = sphi 0, %s32
      %s33 = sphi 0, %s30
      %s34 = sphi 0, %s33
      %s50 = sphi 0, %s34
      %s54 = sphi 0, %s54
      %s56 = sphi 0, %s54
      %s57 = sphi 0, %s56
      %s71 = sphi 0, %s57
      %s75 = sphi 0, %s75
      %s77 = sphi 0, %s75
      %s78 = sphi 0, %s77
      %s92 = sphi 0, %s78
      %s96 = sphi 0, %s96
      %s98 = sphi 0, %s96
      %s99 = sphi 0, %s98
      %s113 = sphi 0, %s99
      %s117 = sphi 0, %s117
      %s119 = sphi 0, %s117
      %s120 = sphi 0, %s119
      %s134 = sphi 0, %s120
      %s138 = sphi 0, %s138
      %s140 = sphi 0, %s138
      %s141 = sphi 0, %s140
      %s155 = sphi 0, %s141
      %s161 = sphi 0, %s163
      %s164 = sphi 0, %s161
      %s165 = sphi 0, %s164
      %s181 = sphi 0, %s165
    $region4: #{tpu_custom_call.1} parent=1 // loop_header_branch
      %23 = sbr.rel (%p21) target = $region8
    $region5: #{tpu_custom_call.1} parent=1 // loop_body
      %s25 = ssub.s32 %s20, 1
      %s26 = ssub.s32 %s20, 2
      %s27 = sadd.s32 %s20, 1
      %s28 = ssub.s32 %s20, %s27
      %p29 = scmp.eq.s32.totalorder %s28, 0
      %s31 = sadd.s32 %s30, 1
      %s32 = scalar_select %p29, %s30, %s31
      %p35 = pneg %p29
      %p36 = scmp.eq.s32.totalorder %s20, 1
      %p37 = por %p35, %p36
      %p38 = scmp.ne.s32.totalorder %s30, %s33
      %p39 = scmp.eq.s32.totalorder %s20, 0
      %p40 = por %p38, %p39
      %p41 = scmp.ne.s32.totalorder %s30, %s33
      %p42 = scmp.eq.s32.totalorder %s25, 1
      %p43 = por %p41, %p42
      %p44 = scmp.ne.s32.totalorder %s33, %s34
      %p45 = scmp.eq.s32.totalorder %s25, 0
      %p46 = por %p44, %p45
      %p47 = scmp.ne.s32.totalorder %s33, %s34
      %p48 = scmp.eq.s32.totalorder %s26, 1
      %p49 = por %p47, %p48
      %p51 = scmp.ne.s32.totalorder %s34, %s50
      %p52 = scmp.eq.s32.totalorder %s26, 0
      %p53 = por %p51, %p52
      %s55 = sadd.s32 %s54, 1
      %p58 = scmp.eq.s32.totalorder %s20, 1
      %p59 = scmp.ne.s32.totalorder %s54, %s56
      %p60 = scmp.eq.s32.totalorder %s20, 0
      %p61 = por %p59, %p60
      %p62 = scmp.ne.s32.totalorder %s54, %s56
      %p63 = scmp.eq.s32.totalorder %s25, 1
      %p64 = por %p62, %p63
      %p65 = scmp.ne.s32.totalorder %s56, %s57
      %p66 = scmp.eq.s32.totalorder %s25, 0
      %p67 = por %p65, %p66
      %p68 = scmp.ne.s32.totalorder %s56, %s57
      %p69 = scmp.eq.s32.totalorder %s26, 1
      %p70 = por %p68, %p69
      %p72 = scmp.ne.s32.totalorder %s57, %s71
      %p73 = scmp.eq.s32.totalorder %s26, 0
      %p74 = por %p72, %p73
      %s76 = sadd.s32 %s75, 1
      %p79 = scmp.eq.s32.totalorder %s20, 1
      %p80 = scmp.ne.s32.totalorder %s75, %s77
      %p81 = scmp.eq.s32.totalorder %s20, 0
      %p82 = por %p80, %p81
      %p83 = scmp.ne.s32.totalorder %s75, %s77
      %p84 = scmp.eq.s32.totalorder %s25, 1
      %p85 = por %p83, %p84
      %p86 = scmp.ne.s32.totalorder %s77, %s78
      %p87 = scmp.eq.s32.totalorder %s25, 0
      %p88 = por %p86, %p87
      %p89 = scmp.ne.s32.totalorder %s77, %s78
      %p90 = scmp.eq.s32.totalorder %s26, 1
      %p91 = por %p89, %p90
      %p93 = scmp.ne.s32.totalorder %s78, %s92
      %p94 = scmp.eq.s32.totalorder %s26, 0
      %p95 = por %p93, %p94
      %s97 = sadd.s32 %s96, 1
      %p100 = scmp.eq.s32.totalorder %s20, 1
      %p101 = scmp.ne.s32.totalorder %s96, %s98
      %p102 = scmp.eq.s32.totalorder %s20, 0
      %p103 = por %p101, %p102
      %p104 = scmp.ne.s32.totalorder %s96, %s98
      %p105 = scmp.eq.s32.totalorder %s25, 1
      %p106 = por %p104, %p105
      %p107 = scmp.ne.s32.totalorder %s98, %s99
      %p108 = scmp.eq.s32.totalorder %s25, 0
      %p109 = por %p107, %p108
      %p110 = scmp.ne.s32.totalorder %s98, %s99
      %p111 = scmp.eq.s32.totalorder %s26, 1
      %p112 = por %p110, %p111
      %p114 = scmp.ne.s32.totalorder %s99, %s113
      %p115 = scmp.eq.s32.totalorder %s26, 0
      %p116 = por %p114, %p115
      %s118 = sadd.s32 %s117, 1
      %p121 = scmp.eq.s32.totalorder %s20, 1
      %p122 = scmp.ne.s32.totalorder %s117, %s119
      %p123 = scmp.eq.s32.totalorder %s20, 0
      %p124 = por %p122, %p123
      %p125 = scmp.ne.s32.totalorder %s117, %s119
      %p126 = scmp.eq.s32.totalorder %s25, 1
      %p127 = por %p125, %p126
      %p128 = scmp.ne.s32.totalorder %s119, %s120
      %p129 = scmp.eq.s32.totalorder %s25, 0
      %p130 = por %p128, %p129
      %p131 = scmp.ne.s32.totalorder %s119, %s120
      %p132 = scmp.eq.s32.totalorder %s26, 1
      %p133 = por %p131, %p132
      %p135 = scmp.ne.s32.totalorder %s120, %s134
      %p136 = scmp.eq.s32.totalorder %s26, 0
      %p137 = por %p135, %p136
      %s139 = sadd.s32 %s138, 1
      %p142 = scmp.eq.s32.totalorder %s20, 1
      %p143 = scmp.ne.s32.totalorder %s138, %s140
      %p144 = scmp.eq.s32.totalorder %s20, 0
      %p145 = por %p143, %p144
      %p146 = scmp.ne.s32.totalorder %s138, %s140
      %p147 = scmp.eq.s32.totalorder %s25, 1
      %p148 = por %p146, %p147
      %p149 = scmp.ne.s32.totalorder %s140, %s141
      %p150 = scmp.eq.s32.totalorder %s25, 0
      %p151 = por %p149, %p150
      %p152 = scmp.ne.s32.totalorder %s140, %s141
      %p153 = scmp.eq.s32.totalorder %s26, 1
      %p154 = por %p152, %p153
      %p156 = scmp.ne.s32.totalorder %s141, %s155
      %p157 = scmp.eq.s32.totalorder %s26, 0
      %p158 = por %p156, %p157
      %s159 = ssub.s32 %s20, %s27
      %p160 = scmp.eq.s32.totalorder %s159, 0
      %s162 = sadd.s32 %s161, 1
      %s163 = scalar_select %p160, %s161, %s162
      %p166 = pneg %p160
      %p167 = scmp.eq.s32.totalorder %s20, 1
      %p168 = por %p166, %p167
      %p169 = scmp.ne.s32.totalorder %s161, %s164
      %p170 = scmp.eq.s32.totalorder %s20, 0
      %p171 = por %p169, %p170
      %p172 = scmp.ne.s32.totalorder %s161, %s164
      %p173 = scmp.eq.s32.totalorder %s25, 1
      %p174 = por %p172, %p173
      %p175 = scmp.ne.s32.totalorder %s164, %s165
      %p176 = scmp.eq.s32.totalorder %s25, 0
      %p177 = por %p175, %p176
      %p178 = scmp.ne.s32.totalorder %s164, %s165
      %p179 = scmp.eq.s32.totalorder %s26, 1
      %p180 = por %p178, %p179
      %p182 = scmp.ne.s32.totalorder %s165, %s181
      %p183 = scmp.eq.s32.totalorder %s26, 0
      %p184 = por %p182, %p183
      %p185 = scmp.le.s32.totalorder 1, %s20
      %p186 = scmp.lt.s32.totalorder %s20, 3
      %p187 = pnand %p185, %p186
      %p188 = pneg %p187
      // Predicated region
      $region9: #{tpu_custom_call.1} parent=5 // pred_check
        _
      $region10: #{tpu_custom_call.1} parent=5 // pred_check_branch
        %190 = sbr.rel (%p187) target = $region12
      $region11: #{tpu_custom_call.1} parent=5 // pred_region
        %s191 = ssub.s32 %s20, 1
        // Predicated region
        $region13: #{tpu_custom_call.1} parent=11 // pred_check
          %p192 = pneg %p67
        $region14: #{tpu_custom_call.1} parent=11 // pred_check_branch
          %194 = sbr.rel (%p192) target = $region16
        $region15: #{tpu_custom_call.1} parent=11 // pred_region
          %s196 = ssub.s32 2048, 2048
          %197 = vsyncadd [#allocation6], %s196
          %s198 = sshll.u32 [#allocation5], 4
          %s199 = int_to_ptr.vmem [resolvable:$true] %s198
          %204 = dma.hbm_to_vmem [thread:$0]  %s1, 2048, %s199, [#allocation6], 128, 128, 8
        $region16: #{tpu_custom_call.1} parent=11 // pred_fallthru
          _
        // Predicated region
        $region17: #{tpu_custom_call.1} parent=11 // pred_check
          %p205 = pneg %p88
        $region18: #{tpu_custom_call.1} parent=11 // pred_check_branch
          %207 = sbr.rel (%p205) target = $region20
        $region19: #{tpu_custom_call.1} parent=11 // pred_region
          %s209 = ssub.s32 14336, 14336
          %210 = vsyncadd [#allocation6], %s209
          %s211 = sshll.u32 [#allocation7], 4
          %s212 = int_to_ptr.vmem [resolvable:$true] %s211
          %217 = dma.hbm_to_vmem [thread:$0]  %s2, 14336, %s212, [#allocation6], 128, 128, 8
        $region20: #{tpu_custom_call.1} parent=11 // pred_fallthru
          _
        // Predicated region
        $region21: #{tpu_custom_call.1} parent=11 // pred_check
          %p218 = pneg %p109
        $region22: #{tpu_custom_call.1} parent=11 // pred_check_branch
          %220 = sbr.rel (%p218) target = $region24
        $region23: #{tpu_custom_call.1} parent=11 // pred_region
          %s222 = ssub.s32 2048, 2048
          %223 = vsyncadd [#allocation9], %s222
          %s224 = sshll.u32 [#allocation8], 4
          %s225 = int_to_ptr.vmem [resolvable:$true] %s224
          %230 = dma.hbm_to_vmem [thread:$0]  %s3, 2048, %s225, [#allocation9], 128, 128, 8
        $region24: #{tpu_custom_call.1} parent=11 // pred_fallthru
          _
        // Predicated region
        $region25: #{tpu_custom_call.1} parent=11 // pred_check
          %p231 = pneg %p130
        $region26: #{tpu_custom_call.1} parent=11 // pred_check_branch
          %233 = sbr.rel (%p231) target = $region28
        $region27: #{tpu_custom_call.1} parent=11 // pred_region
          %s235 = ssub.s32 128, 128
          %236 = vsyncadd [#allocation9], %s235
          %s238 = sshll.u32 [#allocation10], 4
          %s239 = int_to_ptr.vmem [resolvable:$true] %s238
          %241 = dma.hbm_to_vmem [thread:$0]  %s4, 128, %s239, [#allocation9]
        $region28: #{tpu_custom_call.1} parent=11 // pred_fallthru
          _
        // Predicated region
        $region29: #{tpu_custom_call.1} parent=11 // pred_check
          %p242 = pneg %p151
        $region30: #{tpu_custom_call.1} parent=11 // pred_check_branch
          %244 = sbr.rel (%p242) target = $region32
        $region31: #{tpu_custom_call.1} parent=11 // pred_region
          _
        $region32: #{tpu_custom_call.1} parent=11 // pred_fallthru
          _
      $region12: #{tpu_custom_call.1} parent=5 // pred_fallthru
        _
      %p245 = scmp.lt.s32.totalorder %s20, 2
      // Predicated region
      $region33: #{tpu_custom_call.1} parent=5 // pred_check
        %p246 = pneg %p245
      $region34: #{tpu_custom_call.1} parent=5 // pred_check_branch
        %248 = sbr.rel (%p246) target = $region36
      $region35: #{tpu_custom_call.1} parent=5 // pred_region
        // Predicated region
        $region37: #{tpu_custom_call.1} parent=35 // pred_check
          %p249 = pneg %p40
        $region38: #{tpu_custom_call.1} parent=35 // pred_check_branch
          %251 = sbr.rel (%p249) target = $region40
        $region39: #{tpu_custom_call.1} parent=35 // pred_region
          %s252 = sand.u32 %s30, 1
          %s253 = scalar_lea.sflag [#allocation3], %s252
          %s254 = sand.u32 %s30, 1
          %s255 = smul.addr %s254, 8
          %s256 = scalar_lea.vmem [#allocation2], %s255
          %s258 = ssub.s32 128, 128
          %259 = vsyncadd %s253, %s258
          %s260 = smul.addr %s20, 128
          %s261 = scalar_lea.hbm %s0, %s260
          %s263 = sshll.u32 %s256, 4
          %s264 = int_to_ptr.vmem [resolvable:$true] %s263
          %266 = dma.hbm_to_vmem [thread:$0]  %s261, 128, %s264, %s253
        $region40: #{tpu_custom_call.1} parent=35 // pred_fallthru
          _
      $region36: #{tpu_custom_call.1} parent=5 // pred_fallthru
        _
      %p267 = scmp.le.s32.totalorder 1, %s20
      %p268 = scmp.lt.s32.totalorder %s20, 3
      %p269 = pnand %p267, %p268
      %p270 = pneg %p269
      // Predicated region
      $region41: #{tpu_custom_call.1} parent=5 // pred_check
        _
      $region42: #{tpu_custom_call.1} parent=5 // pred_check_branch
        %272 = sbr.rel (%p269) target = $region44
      $region43: #{tpu_custom_call.1} parent=5 // pred_region
        %s273 = ssub.s32 %s20, 1
        %s274 = sand.u32 %s33, 1
        %s275 = scalar_lea.sflag [#allocation3], %s274
        %s276 = sand.u32 %s33, 1
        %s277 = smul.addr %s276, 8
        %s278 = scalar_lea.vmem [#allocation2], %s277
        // Predicated region
        $region45: #{tpu_custom_call.1} parent=43 // pred_check
          %p279 = pneg %p46
        $region46: #{tpu_custom_call.1} parent=43 // pred_check_branch
          %281 = sbr.rel (%p279) target = $region48
        $region47: #{tpu_custom_call.1} parent=43 // pred_region
          %282 = dma.done %s275, 128
        $region48: #{tpu_custom_call.1} parent=43 // pred_fallthru
          _
        // Predicated region
        $region49: #{tpu_custom_call.1} parent=43 // pred_check
          %p283 = pneg %p67
        $region50: #{tpu_custom_call.1} parent=43 // pred_check_branch
          %285 = sbr.rel (%p283) target = $region52
        $region51: #{tpu_custom_call.1} parent=43 // pred_region
          %286 = dma.done [#allocation6], 2048
        $region52: #{tpu_custom_call.1} parent=43 // pred_fallthru
          _
        // Predicated region
        $region53: #{tpu_custom_call.1} parent=43 // pred_check
          %p287 = pneg %p88
        $region54: #{tpu_custom_call.1} parent=43 // pred_check_branch
          %289 = sbr.rel (%p287) target = $region56
        $region55: #{tpu_custom_call.1} parent=43 // pred_region
          %290 = dma.done [#allocation6], 14336
        $region56: #{tpu_custom_call.1} parent=43 // pred_fallthru
          _
        // Predicated region
        $region57: #{tpu_custom_call.1} parent=43 // pred_check
          %p291 = pneg %p109
        $region58: #{tpu_custom_call.1} parent=43 // pred_check_branch
          %293 = sbr.rel (%p291) target = $region60
        $region59: #{tpu_custom_call.1} parent=43 // pred_region
          %294 = dma.done [#allocation9], 2048
        $region60: #{tpu_custom_call.1} parent=43 // pred_fallthru
          _
        // Predicated region
        $region61: #{tpu_custom_call.1} parent=43 // pred_check
          %p295 = pneg %p130
        $region62: #{tpu_custom_call.1} parent=43 // pred_check_branch
          %297 = sbr.rel (%p295) target = $region64
        $region63: #{tpu_custom_call.1} parent=43 // pred_region
          %298 = dma.done [#allocation9], 128
        $region64: #{tpu_custom_call.1} parent=43 // pred_fallthru
          _
        %s299 = sand.u32 %s33, 1
        %s300 = scalar_lea.sflag [#allocation3], %s299
        %s301 = sand.u32 %s33, 1
        %s302 = smul.addr %s301, 8
        %s303 = scalar_lea.vmem [#allocation2], %s302
        %p304 = pneg %p46
        %p305 = pneg %p43
        %p306 = pneg %p67
        %p307 = pneg %p64
        %p308 = pneg %p88
        %p309 = pneg %p85
        %p310 = pneg %p109
        %p311 = pneg %p106
        %p312 = pneg %p130
        %p313 = pneg %p127
        %p314 = pneg %p151
        %p315 = pneg %p148
        %p316 = pneg %p177
        %p317 = pneg %p174
        %s318 = sand.u32 %s164, 1
        %s319 = scalar_lea.sflag [#allocation4], %s318
        %s320 = sand.u32 %s164, 1
        %s321 = smul.addr %s320, 8
        %s322 = scalar_lea.vmem [#allocation11], %s321
        %v323 = vld [vmem:[#allocation10] sm:$0xff]
        %v324 = vld [vmem:[%s278] sm:$0xff]
        %v325 = vld [vmem:[#allocation5] sm:$0xff]
        %v326 = vld [vmem:[#allocation5 + $0x8] sm:$0xff]
        %v327 = vld [vmem:[#allocation5 + $0x10] sm:$0xff]
        %v328 = vld [vmem:[#allocation5 + $0x18] sm:$0xff]
        %v329 = vld [vmem:[#allocation5 + $0x20] sm:$0xff]
        %v330 = vld [vmem:[#allocation5 + $0x28] sm:$0xff]
        %v331 = vld [vmem:[#allocation5 + $0x30] sm:$0xff]
        %v332 = vld [vmem:[#allocation5 + $0x38] sm:$0xff]
        %v333 = vld [vmem:[#allocation5 + $0x40] sm:$0xff]
        %v334 = vld [vmem:[#allocation5 + $0x48] sm:$0xff]
        %v335 = vld [vmem:[#allocation5 + $0x50] sm:$0xff]
        %v336 = vld [vmem:[#allocation5 + $0x58] sm:$0xff]
        %v337 = vld [vmem:[#allocation5 + $0x60] sm:$0xff]
        %v338 = vld [vmem:[#allocation5 + $0x68] sm:$0xff]
        %v339 = vld [vmem:[#allocation5 + $0x70] sm:$0xff]
        %v340 = vld [vmem:[#allocation5 + $0x78] sm:$0xff]
        %v341 = vlaneseq
        %v342 = vshrl.u32 %v341, 7
        %v343 = vsub.s32 0, %v342
        %v344 = vrot.slane %v323, %v343
        %345 = vmatprep.subr.mxu0 0.0
        %346 = vmatpush1.msra.mxu0 %v340
        %347 = vmatprep.subr.mxu0 0.0
        %348 = vmatpush1.msra.mxu0 %v339
        %349 = vmatprep.subr.mxu0 0.0
        %350 = vmatpush1.msra.mxu0 %v338
        %351 = vmatprep.subr.mxu0 0.0
        %352 = vmatpush1.msra.mxu0 %v337
        %353 = vmatprep.subr.mxu0 0.0
        %354 = vmatpush1.msra.mxu0 %v336
        %355 = vmatprep.subr.mxu0 0.0
        %356 = vmatpush1.msra.mxu0 %v335
        %357 = vmatprep.subr.mxu0 0.0
        %358 = vmatpush1.msra.mxu0 %v334
        %359 = vmatprep.subr.mxu0 0.0
        %360 = vmatpush1.msra.mxu0 %v333
        %361 = vmatprep.subr.mxu0 0.0
        %362 = vmatpush1.msra.mxu0 %v332
        %363 = vmatprep.subr.mxu0 0.0
        %364 = vmatpush1.msra.mxu0 %v331
        %365 = vmatprep.subr.mxu0 0.0
        %366 = vmatpush1.msra.mxu0 %v330
        %367 = vmatprep.subr.mxu0 0.0
        %368 = vmatpush1.msra.mxu0 %v329
        %369 = vmatprep.subr.mxu0 0.0
        %370 = vmatpush1.msra.mxu0 %v328
        %371 = vmatprep.subr.mxu0 0.0
        %372 = vmatpush1.msra.mxu0 %v327
        %373 = vmatprep.subr.mxu0 0.0
        %374 = vmatpush1.msra.mxu0 %v326
        %375 = vmatprep.subr.mxu0 0.0
        %376 = vmatpush1.msra.mxu0 %v325
        %377 = vmatprep.subr.mxu0 0.0
        %378 = vmatpush2.msra.mxu0 0.0
        %379 = vmatprep.subr.mxu0 0.0
        %380 = vmatpush2.msra.mxu0 0.0
        %381 = vmatprep.subr.mxu0 0.0
        %382 = vmatpush2.msra.mxu0 0.0
        %383 = vmatprep.subr.mxu0 0.0
        %384 = vmatpush2.msra.mxu0 0.0
        %385 = vmatprep.subr.mxu0 0.0
        %386 = vmatpush2.msra.mxu0 0.0
        %387 = vmatprep.subr.mxu0 0.0
        %388 = vmatpush2.msra.mxu0 0.0
        %389 = vmatprep.subr.mxu0 0.0
        %390 = vmatpush2.msra.mxu0 0.0
        %391 = vmatprep.subr.mxu0 0.0
        %392 = vmatpush2.msra.mxu0 0.0
        %393 = vmatprep.subr.mxu0 0.0
        %394 = vmatpush2.msra.mxu0 0.0
        %395 = vmatprep.subr.mxu0 0.0
        %396 = vmatpush2.msra.mxu0 0.0
        %397 = vmatprep.subr.mxu0 0.0
        %398 = vmatpush2.msra.mxu0 0.0
        %399 = vmatprep.subr.mxu0 0.0
        %400 = vmatpush2.msra.mxu0 0.0
        %401 = vmatprep.subr.mxu0 0.0
        %402 = vmatpush2.msra.mxu0 0.0
        %403 = vmatprep.subr.mxu0 0.0
        %404 = vmatpush2.msra.mxu0 0.0
        %405 = vmatprep.subr.mxu0 0.0
        %406 = vmatpush2.msra.mxu0 0.0
        %407 = vmatprep.subr.mxu0 0.0
        %408 = vmatpush2.msra.mxu0 0.0
        %409 = vmatprep.mubr.f32.mxu0 0.0
        %410 = vmatmul.mubr.f32.gmra.mxu0 %v324
        %v411 = vpop.f32.mrf.mxu0
        %v412 = vadd.f32 %v344, %v411
        %v413 = vpop.f32.mrf.mxu0
        %414 = vdwg.mxu0
        %v415 = vmax.f32 %v412, 0.0
        %v416 = vld [vmem:[#allocation7] sm:$0xff]
        %v417 = vld [vmem:[#allocation7 + $0x8] sm:$0xff]
        %v418 = vld [vmem:[#allocation7 + $0x10] sm:$0xff]
        %v419 = vld [vmem:[#allocation7 + $0x18] sm:$0xff]
        %v420 = vld [vmem:[#allocation7 + $0x20] sm:$0xff]
        %v421 = vld [vmem:[#allocation7 + $0x28] sm:$0xff]
        %v422 = vld [vmem:[#allocation7 + $0x30] sm:$0xff]
        %v423 = vld [vmem:[#allocation7 + $0x38] sm:$0xff]
        %v424 = vld [vmem:[#allocation7 + $0x40] sm:$0xff]
        %v425 = vld [vmem:[#allocation7 + $0x48] sm:$0xff]
        %v426 = vld [vmem:[#allocation7 + $0x50] sm:$0xff]
        %v427 = vld [vmem:[#allocation7 + $0x58] sm:$0xff]
        %v428 = vld [vmem:[#allocation7 + $0x60] sm:$0xff]
        %v429 = vld [vmem:[#allocation7 + $0x68] sm:$0xff]
        %v430 = vld [vmem:[#allocation7 + $0x70] sm:$0xff]
        %v431 = vld [vmem:[#allocation7 + $0x78] sm:$0xff]
        %v432 = vlaneseq
        %v433 = vshrl.u32 %v432, 7
        %v434 = vsub.s32 1, %v433
        %v435 = vrot.slane %v323, %v434
        %436 = vmatprep.subr.mxu0 0.0
        %437 = vmatpush1.msra.mxu0 %v431
        %438 = vmatprep.subr.mxu0 0.0
        %439 = vmatpush1.msra.mxu0 %v430
        %440 = vmatprep.subr.mxu0 0.0
        %441 = vmatpush1.msra.mxu0 %v429
        %442 = vmatprep.subr.mxu0 0.0
        %443 = vmatpush1.msra.mxu0 %v428
        %444 = vmatprep.subr.mxu0 0.0
        %445 = vmatpush1.msra.mxu0 %v427
        %446 = vmatprep.subr.mxu0 0.0
        %447 = vmatpush1.msra.mxu0 %v426
        %448 = vmatprep.subr.mxu0 0.0
        %449 = vmatpush1.msra.mxu0 %v425
        %450 = vmatprep.subr.mxu0 0.0
        %451 = vmatpush1.msra.mxu0 %v424
        %452 = vmatprep.subr.mxu0 0.0
        %453 = vmatpush1.msra.mxu0 %v423
        %454 = vmatprep.subr.mxu0 0.0
        %455 = vmatpush1.msra.mxu0 %v422
        %456 = vmatprep.subr.mxu0 0.0
        %457 = vmatpush1.msra.mxu0 %v421
        %458 = vmatprep.subr.mxu0 0.0
        %459 = vmatpush1.msra.mxu0 %v420
        %460 = vmatprep.subr.mxu0 0.0
        %461 = vmatpush1.msra.mxu0 %v419
        %462 = vmatprep.subr.mxu0 0.0
        %463 = vmatpush1.msra.mxu0 %v418
        %464 = vmatprep.subr.mxu0 0.0
        %465 = vmatpush1.msra.mxu0 %v417
        %466 = vmatprep.subr.mxu0 0.0
        %467 = vmatpush1.msra.mxu0 %v416
        %468 = vmatprep.subr.mxu0 0.0
        %469 = vmatpush2.msra.mxu0 0.0
        %470 = vmatprep.subr.mxu0 0.0
        %471 = vmatpush2.msra.mxu0 0.0
        %472 = vmatprep.subr.mxu0 0.0
        %473 = vmatpush2.msra.mxu0 0.0
        %474 = vmatprep.subr.mxu0 0.0
        %475 = vmatpush2.msra.mxu0 0.0
        %476 = vmatprep.subr.mxu0 0.0
        %477 = vmatpush2.msra.mxu0 0.0
        %478 = vmatprep.subr.mxu0 0.0
        %479 = vmatpush2.msra.mxu0 0.0
        %480 = vmatprep.subr.mxu0 0.0
        %481 = vmatpush2.msra.mxu0 0.0
        %482 = vmatprep.subr.mxu0 0.0
        %483 = vmatpush2.msra.mxu0 0.0
        %484 = vmatprep.subr.mxu0 0.0
        %485 = vmatpush2.msra.mxu0 0.0
        %486 = vmatprep.subr.mxu0 0.0
        %487 = vmatpush2.msra.mxu0 0.0
        %488 = vmatprep.subr.mxu0 0.0
        %489 = vmatpush2.msra.mxu0 0.0
        %490 = vmatprep.subr.mxu0 0.0
        %491 = vmatpush2.msra.mxu0 0.0
        %492 = vmatprep.subr.mxu0 0.0
        %493 = vmatpush2.msra.mxu0 0.0
        %494 = vmatprep.subr.mxu0 0.0
        %495 = vmatpush2.msra.mxu0 0.0
        %496 = vmatprep.subr.mxu0 0.0
        %497 = vmatpush2.msra.mxu0 0.0
        %498 = vmatprep.subr.mxu0 0.0
        %499 = vmatpush2.msra.mxu0 0.0
        %500 = vmatprep.mubr.f32.mxu0 0.0
        %501 = vmatmul.mubr.f32.gmra.mxu0 %v415
        %v502 = vpop.f32.mrf.mxu0
        %v503 = vadd.f32 %v435, %v502
        %v504 = vpop.f32.mrf.mxu0
        %505 = vdwg.mxu0
        %v506 = vmax.f32 %v503, 0.0
        %s507 = scalar_lea.vmem [#allocation7], 128
        %v508 = vld [vmem:[%s507] sm:$0xff]
        %v509 = vld [vmem:[%s507 + $0x8] sm:$0xff]
        %v510 = vld [vmem:[%s507 + $0x10] sm:$0xff]
        %v511 = vld [vmem:[%s507 + $0x18] sm:$0xff]
        %v512 = vld [vmem:[%s507 + $0x20] sm:$0xff]
        %v513 = vld [vmem:[%s507 + $0x28] sm:$0xff]
        %v514 = vld [vmem:[%s507 + $0x30] sm:$0xff]
        %v515 = vld [vmem:[%s507 + $0x38] sm:$0xff]
        %v516 = vld [vmem:[%s507 + $0x40] sm:$0xff]
        %v517 = vld [vmem:[%s507 + $0x48] sm:$0xff]
        %v518 = vld [vmem:[%s507 + $0x50] sm:$0xff]
        %v519 = vld [vmem:[%s507 + $0x58] sm:$0xff]
        %v520 = vld [vmem:[%s507 + $0x60] sm:$0xff]
        %v521 = vld [vmem:[%s507 + $0x68] sm:$0xff]
        %v522 = vld [vmem:[%s507 + $0x70] sm:$0xff]
        %v523 = vld [vmem:[%s507 + $0x78] sm:$0xff]
        %v524 = vlaneseq
        %v525 = vshrl.u32 %v524, 7
        %v526 = vsub.s32 2, %v525
        %v527 = vrot.slane %v323, %v526
        %528 = vmatprep.subr.mxu0 0.0
        %529 = vmatpush1.msra.mxu0 %v523
        %530 = vmatprep.subr.mxu0 0.0
        %531 = vmatpush1.msra.mxu0 %v522
        %532 = vmatprep.subr.mxu0 0.0
        %533 = vmatpush1.msra.mxu0 %v521
        %534 = vmatprep.subr.mxu0 0.0
        %535 = vmatpush1.msra.mxu0 %v520
        %536 = vmatprep.subr.mxu0 0.0
        %537 = vmatpush1.msra.mxu0 %v519
        %538 = vmatprep.subr.mxu0 0.0
        %539 = vmatpush1.msra.mxu0 %v518
        %540 = vmatprep.subr.mxu0 0.0
        %541 = vmatpush1.msra.mxu0 %v517
        %542 = vmatprep.subr.mxu0 0.0
        %543 = vmatpush1.msra.mxu0 %v516
        %544 = vmatprep.subr.mxu0 0.0
        %545 = vmatpush1.msra.mxu0 %v515
        %546 = vmatprep.subr.mxu0 0.0
        %547 = vmatpush1.msra.mxu0 %v514
        %548 = vmatprep.subr.mxu0 0.0
        %549 = vmatpush1.msra.mxu0 %v513
        %550 = vmatprep.subr.mxu0 0.0
        %551 = vmatpush1.msra.mxu0 %v512
        %552 = vmatprep.subr.mxu0 0.0
        %553 = vmatpush1.msra.mxu0 %v511
        %554 = vmatprep.subr.mxu0 0.0
        %555 = vmatpush1.msra.mxu0 %v510
        %556 = vmatprep.subr.mxu0 0.0
        %557 = vmatpush1.msra.mxu0 %v509
        %558 = vmatprep.subr.mxu0 0.0
        %559 = vmatpush1.msra.mxu0 %v508
        %560 = vmatprep.subr.mxu0 0.0
        %561 = vmatpush2.msra.mxu0 0.0
        %562 = vmatprep.subr.mxu0 0.0
        %563 = vmatpush2.msra.mxu0 0.0
        %564 = vmatprep.subr.mxu0 0.0
        %565 = vmatpush2.msra.mxu0 0.0
        %566 = vmatprep.subr.mxu0 0.0
        %567 = vmatpush2.msra.mxu0 0.0
        %568 = vmatprep.subr.mxu0 0.0
        %569 = vmatpush2.msra.mxu0 0.0
        %570 = vmatprep.subr.mxu0 0.0
        %571 = vmatpush2.msra.mxu0 0.0
        %572 = vmatprep.subr.mxu0 0.0
        %573 = vmatpush2.msra.mxu0 0.0
        %574 = vmatprep.subr.mxu0 0.0
        %575 = vmatpush2.msra.mxu0 0.0
        %576 = vmatprep.subr.mxu0 0.0
        %577 = vmatpush2.msra.mxu0 0.0
        %578 = vmatprep.subr.mxu0 0.0
        %579 = vmatpush2.msra.mxu0 0.0
        %580 = vmatprep.subr.mxu0 0.0
        %581 = vmatpush2.msra.mxu0 0.0
        %582 = vmatprep.subr.mxu0 0.0
        %583 = vmatpush2.msra.mxu0 0.0
        %584 = vmatprep.subr.mxu0 0.0
        %585 = vmatpush2.msra.mxu0 0.0
        %586 = vmatprep.subr.mxu0 0.0
        %587 = vmatpush2.msra.mxu0 0.0
        %588 = vmatprep.subr.mxu0 0.0
        %589 = vmatpush2.msra.mxu0 0.0
        %590 = vmatprep.subr.mxu0 0.0
        %591 = vmatpush2.msra.mxu0 0.0
        %592 = vmatprep.mubr.f32.mxu0 0.0
        %593 = vmatmul.mubr.f32.gmra.mxu0 %v506
        %v594 = vpop.f32.mrf.mxu0
        %v595 = vadd.f32 %v527, %v594
        %v596 = vpop.f32.mrf.mxu0
        %597 = vdwg.mxu0
        %v598 = vmax.f32 %v595, 0.0
        %s599 = scalar_lea.vmem [#allocation7], 256
        %v600 = vld [vmem:[%s599] sm:$0xff]
        %v601 = vld [vmem:[%s599 + $0x8] sm:$0xff]
        %v602 = vld [vmem:[%s599 + $0x10] sm:$0xff]
        %v603 = vld [vmem:[%s599 + $0x18] sm:$0xff]
        %v604 = vld [vmem:[%s599 + $0x20] sm:$0xff]
        %v605 = vld [vmem:[%s599 + $0x28] sm:$0xff]
        %v606 = vld [vmem:[%s599 + $0x30] sm:$0xff]
        %v607 = vld [vmem:[%s599 + $0x38] sm:$0xff]
        %v608 = vld [vmem:[%s599 + $0x40] sm:$0xff]
        %v609 = vld [vmem:[%s599 + $0x48] sm:$0xff]
        %v610 = vld [vmem:[%s599 + $0x50] sm:$0xff]
        %v611 = vld [vmem:[%s599 + $0x58] sm:$0xff]
        %v612 = vld [vmem:[%s599 + $0x60] sm:$0xff]
        %v613 = vld [vmem:[%s599 + $0x68] sm:$0xff]
        %v614 = vld [vmem:[%s599 + $0x70] sm:$0xff]
        %v615 = vld [vmem:[%s599 + $0x78] sm:$0xff]
        %v616 = vlaneseq
        %v617 = vshrl.u32 %v616, 7
        %v618 = vsub.s32 3, %v617
        %v619 = vrot.slane %v323, %v618
        %620 = vmatprep.subr.mxu0 0.0
        %621 = vmatpush1.msra.mxu0 %v615
        %622 = vmatprep.subr.mxu0 0.0
        %623 = vmatpush1.msra.mxu0 %v614
        %624 = vmatprep.subr.mxu0 0.0
        %625 = vmatpush1.msra.mxu0 %v613
        %626 = vmatprep.subr.mxu0 0.0
        %627 = vmatpush1.msra.mxu0 %v612
        %628 = vmatprep.subr.mxu0 0.0
        %629 = vmatpush1.msra.mxu0 %v611
        %630 = vmatprep.subr.mxu0 0.0
        %631 = vmatpush1.msra.mxu0 %v610
        %632 = vmatprep.subr.mxu0 0.0
        %633 = vmatpush1.msra.mxu0 %v609
        %634 = vmatprep.subr.mxu0 0.0
        %635 = vmatpush1.msra.mxu0 %v608
        %636 = vmatprep.subr.mxu0 0.0
        %637 = vmatpush1.msra.mxu0 %v607
        %638 = vmatprep.subr.mxu0 0.0
        %639 = vmatpush1.msra.mxu0 %v606
        %640 = vmatprep.subr.mxu0 0.0
        %641 = vmatpush1.msra.mxu0 %v605
        %642 = vmatprep.subr.mxu0 0.0
        %643 = vmatpush1.msra.mxu0 %v604
        %644 = vmatprep.subr.mxu0 0.0
        %645 = vmatpush1.msra.mxu0 %v603
        %646 = vmatprep.subr.mxu0 0.0
        %647 = vmatpush1.msra.mxu0 %v602
        %648 = vmatprep.subr.mxu0 0.0
        %649 = vmatpush1.msra.mxu0 %v601
        %650 = vmatprep.subr.mxu0 0.0
        %651 = vmatpush1.msra.mxu0 %v600
        %652 = vmatprep.subr.mxu0 0.0
        %653 = vmatpush2.msra.mxu0 0.0
        %654 = vmatprep.subr.mxu0 0.0
        %655 = vmatpush2.msra.mxu0 0.0
        %656 = vmatprep.subr.mxu0 0.0
        %657 = vmatpush2.msra.mxu0 0.0
        %658 = vmatprep.subr.mxu0 0.0
        %659 = vmatpush2.msra.mxu0 0.0
        %660 = vmatprep.subr.mxu0 0.0
        %661 = vmatpush2.msra.mxu0 0.0
        %662 = vmatprep.subr.mxu0 0.0
        %663 = vmatpush2.msra.mxu0 0.0
        %664 = vmatprep.subr.mxu0 0.0
        %665 = vmatpush2.msra.mxu0 0.0
        %666 = vmatprep.subr.mxu0 0.0
        %667 = vmatpush2.msra.mxu0 0.0
        %668 = vmatprep.subr.mxu0 0.0
        %669 = vmatpush2.msra.mxu0 0.0
        %670 = vmatprep.subr.mxu0 0.0
        %671 = vmatpush2.msra.mxu0 0.0
        %672 = vmatprep.subr.mxu0 0.0
        %673 = vmatpush2.msra.mxu0 0.0
        %674 = vmatprep.subr.mxu0 0.0
        %675 = vmatpush2.msra.mxu0 0.0
        %676 = vmatprep.subr.mxu0 0.0
        %677 = vmatpush2.msra.mxu0 0.0
        %678 = vmatprep.subr.mxu0 0.0
        %679 = vmatpush2.msra.mxu0 0.0
        %680 = vmatprep.subr.mxu0 0.0
        %681 = vmatpush2.msra.mxu0 0.0
        %682 = vmatprep.subr.mxu0 0.0
        %683 = vmatpush2.msra.mxu0 0.0
        %684 = vmatprep.mubr.f32.mxu0 0.0
        %685 = vmatmul.mubr.f32.gmra.mxu0 %v598
        %v686 = vpop.f32.mrf.mxu0
        %v687 = vadd.f32 %v619, %v686
        %v688 = vpop.f32.mrf.mxu0
        %689 = vdwg.mxu0
        %v690 = vmax.f32 %v687, 0.0
        %s691 = scalar_lea.vmem [#allocation7], 384
        %v692 = vld [vmem:[%s691] sm:$0xff]
        %v693 = vld [vmem:[%s691 + $0x8] sm:$0xff]
        %v694 = vld [vmem:[%s691 + $0x10] sm:$0xff]
        %v695 = vld [vmem:[%s691 + $0x18] sm:$0xff]
        %v696 = vld [vmem:[%s691 + $0x20] sm:$0xff]
        %v697 = vld [vmem:[%s691 + $0x28] sm:$0xff]
        %v698 = vld [vmem:[%s691 + $0x30] sm:$0xff]
        %v699 = vld [vmem:[%s691 + $0x38] sm:$0xff]
        %v700 = vld [vmem:[%s691 + $0x40] sm:$0xff]
        %v701 = vld [vmem:[%s691 + $0x48] sm:$0xff]
        %v702 = vld [vmem:[%s691 + $0x50] sm:$0xff]
        %v703 = vld [vmem:[%s691 + $0x58] sm:$0xff]
        %v704 = vld [vmem:[%s691 + $0x60] sm:$0xff]
        %v705 = vld [vmem:[%s691 + $0x68] sm:$0xff]
        %v706 = vld [vmem:[%s691 + $0x70] sm:$0xff]
        %v707 = vld [vmem:[%s691 + $0x78] sm:$0xff]
        %v708 = vlaneseq
        %v709 = vshrl.u32 %v708, 7
        %v710 = vsub.s32 4, %v709
        %v711 = vrot.slane %v323, %v710
        %712 = vmatprep.subr.mxu0 0.0
        %713 = vmatpush1.msra.mxu0 %v707
        %714 = vmatprep.subr.mxu0 0.0
        %715 = vmatpush1.msra.mxu0 %v706
        %716 = vmatprep.subr.mxu0 0.0
        %717 = vmatpush1.msra.mxu0 %v705
        %718 = vmatprep.subr.mxu0 0.0
        %719 = vmatpush1.msra.mxu0 %v704
        %720 = vmatprep.subr.mxu0 0.0
        %721 = vmatpush1.msra.mxu0 %v703
        %722 = vmatprep.subr.mxu0 0.0
        %723 = vmatpush1.msra.mxu0 %v702
        %724 = vmatprep.subr.mxu0 0.0
        %725 = vmatpush1.msra.mxu0 %v701
        %726 = vmatprep.subr.mxu0 0.0
        %727 = vmatpush1.msra.mxu0 %v700
        %728 = vmatprep.subr.mxu0 0.0
        %729 = vmatpush1.msra.mxu0 %v699
        %730 = vmatprep.subr.mxu0 0.0
        %731 = vmatpush1.msra.mxu0 %v698
        %732 = vmatprep.subr.mxu0 0.0
        %733 = vmatpush1.msra.mxu0 %v697
        %734 = vmatprep.subr.mxu0 0.0
        %735 = vmatpush1.msra.mxu0 %v696
        %736 = vmatprep.subr.mxu0 0.0
        %737 = vmatpush1.msra.mxu0 %v695
        %738 = vmatprep.subr.mxu0 0.0
        %739 = vmatpush1.msra.mxu0 %v694
        %740 = vmatprep.subr.mxu0 0.0
        %741 = vmatpush1.msra.mxu0 %v693
        %742 = vmatprep.subr.mxu0 0.0
        %743 = vmatpush1.msra.mxu0 %v692
        %744 = vmatprep.subr.mxu0 0.0
        %745 = vmatpush2.msra.mxu0 0.0
        %746 = vmatprep.subr.mxu0 0.0
        %747 = vmatpush2.msra.mxu0 0.0
        %748 = vmatprep.subr.mxu0 0.0
        %749 = vmatpush2.msra.mxu0 0.0
        %750 = vmatprep.subr.mxu0 0.0
        %751 = vmatpush2.msra.mxu0 0.0
        %752 = vmatprep.subr.mxu0 0.0
        %753 = vmatpush2.msra.mxu0 0.0
        %754 = vmatprep.subr.mxu0 0.0
        %755 = vmatpush2.msra.mxu0 0.0
        %756 = vmatprep.subr.mxu0 0.0
        %757 = vmatpush2.msra.mxu0 0.0
        %758 = vmatprep.subr.mxu0 0.0
        %759 = vmatpush2.msra.mxu0 0.0
        %760 = vmatprep.subr.mxu0 0.0
        %761 = vmatpush2.msra.mxu0 0.0
        %762 = vmatprep.subr.mxu0 0.0
        %763 = vmatpush2.msra.mxu0 0.0
        %764 = vmatprep.subr.mxu0 0.0
        %765 = vmatpush2.msra.mxu0 0.0
        %766 = vmatprep.subr.mxu0 0.0
        %767 = vmatpush2.msra.mxu0 0.0
        %768 = vmatprep.subr.mxu0 0.0
        %769 = vmatpush2.msra.mxu0 0.0
        %770 = vmatprep.subr.mxu0 0.0
        %771 = vmatpush2.msra.mxu0 0.0
        %772 = vmatprep.subr.mxu0 0.0
        %773 = vmatpush2.msra.mxu0 0.0
        %774 = vmatprep.subr.mxu0 0.0
        %775 = vmatpush2.msra.mxu0 0.0
        %776 = vmatprep.mubr.f32.mxu0 0.0
        %777 = vmatmul.mubr.f32.gmra.mxu0 %v690
        %v778 = vpop.f32.mrf.mxu0
        %v779 = vadd.f32 %v711, %v778
        %v780 = vpop.f32.mrf.mxu0
        %781 = vdwg.mxu0
        %v782 = vmax.f32 %v779, 0.0
        %s783 = scalar_lea.vmem [#allocation7], 512
        %v784 = vld [vmem:[%s783] sm:$0xff]
        %v785 = vld [vmem:[%s783 + $0x8] sm:$0xff]
        %v786 = vld [vmem:[%s783 + $0x10] sm:$0xff]
        %v787 = vld [vmem:[%s783 + $0x18] sm:$0xff]
        %v788 = vld [vmem:[%s783 + $0x20] sm:$0xff]
        %v789 = vld [vmem:[%s783 + $0x28] sm:$0xff]
        %v790 = vld [vmem:[%s783 + $0x30] sm:$0xff]
        %v791 = vld [vmem:[%s783 + $0x38] sm:$0xff]
        %v792 = vld [vmem:[%s783 + $0x40] sm:$0xff]
        %v793 = vld [vmem:[%s783 + $0x48] sm:$0xff]
        %v794 = vld [vmem:[%s783 + $0x50] sm:$0xff]
        %v795 = vld [vmem:[%s783 + $0x58] sm:$0xff]
        %v796 = vld [vmem:[%s783 + $0x60] sm:$0xff]
        %v797 = vld [vmem:[%s783 + $0x68] sm:$0xff]
        %v798 = vld [vmem:[%s783 + $0x70] sm:$0xff]
        %v799 = vld [vmem:[%s783 + $0x78] sm:$0xff]
        %v800 = vlaneseq
        %v801 = vshrl.u32 %v800, 7
        %v802 = vsub.s32 5, %v801
        %v803 = vrot.slane %v323, %v802
        %804 = vmatprep.subr.mxu0 0.0
        %805 = vmatpush1.msra.mxu0 %v799
        %806 = vmatprep.subr.mxu0 0.0
        %807 = vmatpush1.msra.mxu0 %v798
        %808 = vmatprep.subr.mxu0 0.0
        %809 = vmatpush1.msra.mxu0 %v797
        %810 = vmatprep.subr.mxu0 0.0
        %811 = vmatpush1.msra.mxu0 %v796
        %812 = vmatprep.subr.mxu0 0.0
        %813 = vmatpush1.msra.mxu0 %v795
        %814 = vmatprep.subr.mxu0 0.0
        %815 = vmatpush1.msra.mxu0 %v794
        %816 = vmatprep.subr.mxu0 0.0
        %817 = vmatpush1.msra.mxu0 %v793
        %818 = vmatprep.subr.mxu0 0.0
        %819 = vmatpush1.msra.mxu0 %v792
        %820 = vmatprep.subr.mxu0 0.0
        %821 = vmatpush1.msra.mxu0 %v791
        %822 = vmatprep.subr.mxu0 0.0
        %823 = vmatpush1.msra.mxu0 %v790
        %824 = vmatprep.subr.mxu0 0.0
        %825 = vmatpush1.msra.mxu0 %v789
        %826 = vmatprep.subr.mxu0 0.0
        %827 = vmatpush1.msra.mxu0 %v788
        %828 = vmatprep.subr.mxu0 0.0
        %829 = vmatpush1.msra.mxu0 %v787
        %830 = vmatprep.subr.mxu0 0.0
        %831 = vmatpush1.msra.mxu0 %v786
        %832 = vmatprep.subr.mxu0 0.0
        %833 = vmatpush1.msra.mxu0 %v785
        %834 = vmatprep.subr.mxu0 0.0
        %835 = vmatpush1.msra.mxu0 %v784
        %836 = vmatprep.subr.mxu0 0.0
        %837 = vmatpush2.msra.mxu0 0.0
        %838 = vmatprep.subr.mxu0 0.0
        %839 = vmatpush2.msra.mxu0 0.0
        %840 = vmatprep.subr.mxu0 0.0
        %841 = vmatpush2.msra.mxu0 0.0
        %842 = vmatprep.subr.mxu0 0.0
        %843 = vmatpush2.msra.mxu0 0.0
        %844 = vmatprep.subr.mxu0 0.0
        %845 = vmatpush2.msra.mxu0 0.0
        %846 = vmatprep.subr.mxu0 0.0
        %847 = vmatpush2.msra.mxu0 0.0
        %848 = vmatprep.subr.mxu0 0.0
        %849 = vmatpush2.msra.mxu0 0.0
        %850 = vmatprep.subr.mxu0 0.0
        %851 = vmatpush2.msra.mxu0 0.0
        %852 = vmatprep.subr.mxu0 0.0
        %853 = vmatpush2.msra.mxu0 0.0
        %854 = vmatprep.subr.mxu0 0.0
        %855 = vmatpush2.msra.mxu0 0.0
        %856 = vmatprep.subr.mxu0 0.0
        %857 = vmatpush2.msra.mxu0 0.0
        %858 = vmatprep.subr.mxu0 0.0
        %859 = vmatpush2.msra.mxu0 0.0
        %860 = vmatprep.subr.mxu0 0.0
        %861 = vmatpush2.msra.mxu0 0.0
        %862 = vmatprep.subr.mxu0 0.0
        %863 = vmatpush2.msra.mxu0 0.0
        %864 = vmatprep.subr.mxu0 0.0
        %865 = vmatpush2.msra.mxu0 0.0
        %866 = vmatprep.subr.mxu0 0.0
        %867 = vmatpush2.msra.mxu0 0.0
        %868 = vmatprep.mubr.f32.mxu0 0.0
        %869 = vmatmul.mubr.f32.gmra.mxu0 %v782
        %v870 = vpop.f32.mrf.mxu0
        %v871 = vadd.f32 %v803, %v870
        %v872 = vpop.f32.mrf.mxu0
        %873 = vdwg.mxu0
        %v874 = vmax.f32 %v871, 0.0
        %s875 = scalar_lea.vmem [#allocation7], 640
        %v876 = vld [vmem:[%s875] sm:$0xff]
        %v877 = vld [vmem:[%s875 + $0x8] sm:$0xff]
        %v878 = vld [vmem:[%s875 + $0x10] sm:$0xff]
        %v879 = vld [vmem:[%s875 + $0x18] sm:$0xff]
        %v880 = vld [vmem:[%s875 + $0x20] sm:$0xff]
        %v881 = vld [vmem:[%s875 + $0x28] sm:$0xff]
        %v882 = vld [vmem:[%s875 + $0x30] sm:$0xff]
        %v883 = vld [vmem:[%s875 + $0x38] sm:$0xff]
        %v884 = vld [vmem:[%s875 + $0x40] sm:$0xff]
        %v885 = vld [vmem:[%s875 + $0x48] sm:$0xff]
        %v886 = vld [vmem:[%s875 + $0x50] sm:$0xff]
        %v887 = vld [vmem:[%s875 + $0x58] sm:$0xff]
        %v888 = vld [vmem:[%s875 + $0x60] sm:$0xff]
        %v889 = vld [vmem:[%s875 + $0x68] sm:$0xff]
        %v890 = vld [vmem:[%s875 + $0x70] sm:$0xff]
        %v891 = vld [vmem:[%s875 + $0x78] sm:$0xff]
        %v892 = vlaneseq
        %v893 = vshrl.u32 %v892, 7
        %v894 = vsub.s32 6, %v893
        %v895 = vrot.slane %v323, %v894
        %896 = vmatprep.subr.mxu0 0.0
        %897 = vmatpush1.msra.mxu0 %v891
        %898 = vmatprep.subr.mxu0 0.0
        %899 = vmatpush1.msra.mxu0 %v890
        %900 = vmatprep.subr.mxu0 0.0
        %901 = vmatpush1.msra.mxu0 %v889
        %902 = vmatprep.subr.mxu0 0.0
        %903 = vmatpush1.msra.mxu0 %v888
        %904 = vmatprep.subr.mxu0 0.0
        %905 = vmatpush1.msra.mxu0 %v887
        %906 = vmatprep.subr.mxu0 0.0
        %907 = vmatpush1.msra.mxu0 %v886
        %908 = vmatprep.subr.mxu0 0.0
        %909 = vmatpush1.msra.mxu0 %v885
        %910 = vmatprep.subr.mxu0 0.0
        %911 = vmatpush1.msra.mxu0 %v884
        %912 = vmatprep.subr.mxu0 0.0
        %913 = vmatpush1.msra.mxu0 %v883
        %914 = vmatprep.subr.mxu0 0.0
        %915 = vmatpush1.msra.mxu0 %v882
        %916 = vmatprep.subr.mxu0 0.0
        %917 = vmatpush1.msra.mxu0 %v881
        %918 = vmatprep.subr.mxu0 0.0
        %919 = vmatpush1.msra.mxu0 %v880
        %920 = vmatprep.subr.mxu0 0.0
        %921 = vmatpush1.msra.mxu0 %v879
        %922 = vmatprep.subr.mxu0 0.0
        %923 = vmatpush1.msra.mxu0 %v878
        %924 = vmatprep.subr.mxu0 0.0
        %925 = vmatpush1.msra.mxu0 %v877
        %926 = vmatprep.subr.mxu0 0.0
        %927 = vmatpush1.msra.mxu0 %v876
        %928 = vmatprep.subr.mxu0 0.0
        %929 = vmatpush2.msra.mxu0 0.0
        %930 = vmatprep.subr.mxu0 0.0
        %931 = vmatpush2.msra.mxu0 0.0
        %932 = vmatprep.subr.mxu0 0.0
        %933 = vmatpush2.msra.mxu0 0.0
        %934 = vmatprep.subr.mxu0 0.0
        %935 = vmatpush2.msra.mxu0 0.0
        %936 = vmatprep.subr.mxu0 0.0
        %937 = vmatpush2.msra.mxu0 0.0
        %938 = vmatprep.subr.mxu0 0.0
        %939 = vmatpush2.msra.mxu0 0.0
        %940 = vmatprep.subr.mxu0 0.0
        %941 = vmatpush2.msra.mxu0 0.0
        %942 = vmatprep.subr.mxu0 0.0
        %943 = vmatpush2.msra.mxu0 0.0
        %944 = vmatprep.subr.mxu0 0.0
        %945 = vmatpush2.msra.mxu0 0.0
        %946 = vmatprep.subr.mxu0 0.0
        %947 = vmatpush2.msra.mxu0 0.0
        %948 = vmatprep.subr.mxu0 0.0
        %949 = vmatpush2.msra.mxu0 0.0
        %950 = vmatprep.subr.mxu0 0.0
        %951 = vmatpush2.msra.mxu0 0.0
        %952 = vmatprep.subr.mxu0 0.0
        %953 = vmatpush2.msra.mxu0 0.0
        %954 = vmatprep.subr.mxu0 0.0
        %955 = vmatpush2.msra.mxu0 0.0
        %956 = vmatprep.subr.mxu0 0.0
        %957 = vmatpush2.msra.mxu0 0.0
        %958 = vmatprep.subr.mxu0 0.0
        %959 = vmatpush2.msra.mxu0 0.0
        %960 = vmatprep.mubr.f32.mxu0 0.0
        %961 = vmatmul.mubr.f32.gmra.mxu0 %v874
        %v962 = vpop.f32.mrf.mxu0
        %v963 = vadd.f32 %v895, %v962
        %v964 = vpop.f32.mrf.mxu0
        %965 = vdwg.mxu0
        %v966 = vmax.f32 %v963, 0.0
        %s967 = scalar_lea.vmem [#allocation7], 768
        %v968 = vld [vmem:[%s967] sm:$0xff]
        %v969 = vld [vmem:[%s967 + $0x8] sm:$0xff]
        %v970 = vld [vmem:[%s967 + $0x10] sm:$0xff]
        %v971 = vld [vmem:[%s967 + $0x18] sm:$0xff]
        %v972 = vld [vmem:[%s967 + $0x20] sm:$0xff]
        %v973 = vld [vmem:[%s967 + $0x28] sm:$0xff]
        %v974 = vld [vmem:[%s967 + $0x30] sm:$0xff]
        %v975 = vld [vmem:[%s967 + $0x38] sm:$0xff]
        %v976 = vld [vmem:[%s967 + $0x40] sm:$0xff]
        %v977 = vld [vmem:[%s967 + $0x48] sm:$0xff]
        %v978 = vld [vmem:[%s967 + $0x50] sm:$0xff]
        %v979 = vld [vmem:[%s967 + $0x58] sm:$0xff]
        %v980 = vld [vmem:[%s967 + $0x60] sm:$0xff]
        %v981 = vld [vmem:[%s967 + $0x68] sm:$0xff]
        %v982 = vld [vmem:[%s967 + $0x70] sm:$0xff]
        %v983 = vld [vmem:[%s967 + $0x78] sm:$0xff]
        %v984 = vlaneseq
        %v985 = vshrl.u32 %v984, 7
        %v986 = vsub.s32 7, %v985
        %v987 = vrot.slane %v323, %v986
        %988 = vmatprep.subr.mxu0 0.0
        %989 = vmatpush1.msra.mxu0 %v983
        %990 = vmatprep.subr.mxu0 0.0
        %991 = vmatpush1.msra.mxu0 %v982
        %992 = vmatprep.subr.mxu0 0.0
        %993 = vmatpush1.msra.mxu0 %v981
        %994 = vmatprep.subr.mxu0 0.0
        %995 = vmatpush1.msra.mxu0 %v980
        %996 = vmatprep.subr.mxu0 0.0
        %997 = vmatpush1.msra.mxu0 %v979
        %998 = vmatprep.subr.mxu0 0.0
        %999 = vmatpush1.msra.mxu0 %v978
        %1000 = vmatprep.subr.mxu0 0.0
        %1001 = vmatpush1.msra.mxu0 %v977
        %1002 = vmatprep.subr.mxu0 0.0
        %1003 = vmatpush1.msra.mxu0 %v976
        %1004 = vmatprep.subr.mxu0 0.0
        %1005 = vmatpush1.msra.mxu0 %v975
        %1006 = vmatprep.subr.mxu0 0.0
        %1007 = vmatpush1.msra.mxu0 %v974
        %1008 = vmatprep.subr.mxu0 0.0
        %1009 = vmatpush1.msra.mxu0 %v973
        %1010 = vmatprep.subr.mxu0 0.0
        %1011 = vmatpush1.msra.mxu0 %v972
        %1012 = vmatprep.subr.mxu0 0.0
        %1013 = vmatpush1.msra.mxu0 %v971
        %1014 = vmatprep.subr.mxu0 0.0
        %1015 = vmatpush1.msra.mxu0 %v970
        %1016 = vmatprep.subr.mxu0 0.0
        %1017 = vmatpush1.msra.mxu0 %v969
        %1018 = vmatprep.subr.mxu0 0.0
        %1019 = vmatpush1.msra.mxu0 %v968
        %1020 = vmatprep.subr.mxu0 0.0
        %1021 = vmatpush2.msra.mxu0 0.0
        %1022 = vmatprep.subr.mxu0 0.0
        %1023 = vmatpush2.msra.mxu0 0.0
        %1024 = vmatprep.subr.mxu0 0.0
        %1025 = vmatpush2.msra.mxu0 0.0
        %1026 = vmatprep.subr.mxu0 0.0
        %1027 = vmatpush2.msra.mxu0 0.0
        %1028 = vmatprep.subr.mxu0 0.0
        %1029 = vmatpush2.msra.mxu0 0.0
        %1030 = vmatprep.subr.mxu0 0.0
        %1031 = vmatpush2.msra.mxu0 0.0
        %1032 = vmatprep.subr.mxu0 0.0
        %1033 = vmatpush2.msra.mxu0 0.0
        %1034 = vmatprep.subr.mxu0 0.0
        %1035 = vmatpush2.msra.mxu0 0.0
        %1036 = vmatprep.subr.mxu0 0.0
        %1037 = vmatpush2.msra.mxu0 0.0
        %1038 = vmatprep.subr.mxu0 0.0
        %1039 = vmatpush2.msra.mxu0 0.0
        %1040 = vmatprep.subr.mxu0 0.0
        %1041 = vmatpush2.msra.mxu0 0.0
        %1042 = vmatprep.subr.mxu0 0.0
        %1043 = vmatpush2.msra.mxu0 0.0
        %1044 = vmatprep.subr.mxu0 0.0
        %1045 = vmatpush2.msra.mxu0 0.0
        %1046 = vmatprep.subr.mxu0 0.0
        %1047 = vmatpush2.msra.mxu0 0.0
        %1048 = vmatprep.subr.mxu0 0.0
        %1049 = vmatpush2.msra.mxu0 0.0
        %1050 = vmatprep.subr.mxu0 0.0
        %1051 = vmatpush2.msra.mxu0 0.0
        %1052 = vmatprep.mubr.f32.mxu0 0.0
        %1053 = vmatmul.mubr.f32.gmra.mxu0 %v966
        %v1054 = vpop.f32.mrf.mxu0
        %v1055 = vadd.f32 %v987, %v1054
        %v1056 = vpop.f32.mrf.mxu0
        %1057 = vdwg.mxu0
        %v1058 = vmax.f32 %v1055, 0.0
        %v1059 = vld [vmem:[#allocation8] sm:$0xff]
        %v1060 = vld [vmem:[#allocation8 + $0x8] sm:$0xff]
        %v1061 = vld [vmem:[#allocation8 + $0x10] sm:$0xff]
        %v1062 = vld [vmem:[#allocation8 + $0x18] sm:$0xff]
        %v1063 = vld [vmem:[#allocation8 + $0x20] sm:$0xff]
        %v1064 = vld [vmem:[#allocation8 + $0x28] sm:$0xff]
        %v1065 = vld [vmem:[#allocation8 + $0x30] sm:$0xff]
        %v1066 = vld [vmem:[#allocation8 + $0x38] sm:$0xff]
        %v1067 = vld [vmem:[#allocation8 + $0x40] sm:$0xff]
        %v1068 = vld [vmem:[#allocation8 + $0x48] sm:$0xff]
        %v1069 = vld [vmem:[#allocation8 + $0x50] sm:$0xff]
        %v1070 = vld [vmem:[#allocation8 + $0x58] sm:$0xff]
        %v1071 = vld [vmem:[#allocation8 + $0x60] sm:$0xff]
        %v1072 = vld [vmem:[#allocation8 + $0x68] sm:$0xff]
        %v1073 = vld [vmem:[#allocation8 + $0x70] sm:$0xff]
        %v1074 = vld [vmem:[#allocation8 + $0x78] sm:$0xff]
        %v1075 = vld [vmem:[%s5] sm:$0x1]
        %v1077 = vlaneseq
        %v1078 = vshrl.u32 %v1077, 7
        %v1079 = vsub.s32 0, %v1078
        %v1080 = vrot.slane %v1075, %v1079
        %1082 = vmatprep.subr.mxu0 0.0
        %1083 = vmatpush1.msra.mxu0 %v1074
        %1084 = vmatprep.subr.mxu0 0.0
        %1085 = vmatpush1.msra.mxu0 %v1073
        %1086 = vmatprep.subr.mxu0 0.0
        %1087 = vmatpush1.msra.mxu0 %v1072
        %1088 = vmatprep.subr.mxu0 0.0
        %1089 = vmatpush1.msra.mxu0 %v1071
        %1090 = vmatprep.subr.mxu0 0.0
        %1091 = vmatpush1.msra.mxu0 %v1070
        %1092 = vmatprep.subr.mxu0 0.0
        %1093 = vmatpush1.msra.mxu0 %v1069
        %1094 = vmatprep.subr.mxu0 0.0
        %1095 = vmatpush1.msra.mxu0 %v1068
        %1096 = vmatprep.subr.mxu0 0.0
        %1097 = vmatpush1.msra.mxu0 %v1067
        %1098 = vmatprep.subr.mxu0 0.0
        %1099 = vmatpush1.msra.mxu0 %v1066
        %1100 = vmatprep.subr.mxu0 0.0
        %1101 = vmatpush1.msra.mxu0 %v1065
        %1102 = vmatprep.subr.mxu0 0.0
        %1103 = vmatpush1.msra.mxu0 %v1064
        %1104 = vmatprep.subr.mxu0 0.0
        %1105 = vmatpush1.msra.mxu0 %v1063
        %1106 = vmatprep.subr.mxu0 0.0
        %1107 = vmatpush1.msra.mxu0 %v1062
        %1108 = vmatprep.subr.mxu0 0.0
        %1109 = vmatpush1.msra.mxu0 %v1061
        %1110 = vmatprep.subr.mxu0 0.0
        %1111 = vmatpush1.msra.mxu0 %v1060
        %1112 = vmatprep.subr.mxu0 0.0
        %1113 = vmatpush1.msra.mxu0 %v1059
        %1114 = vmatprep.subr.mxu0 0.0
        %1115 = vmatpush2.msra.mxu0 0.0
        %1116 = vmatprep.subr.mxu0 0.0
        %1117 = vmatpush2.msra.mxu0 0.0
        %1118 = vmatprep.subr.mxu0 0.0
        %1119 = vmatpush2.msra.mxu0 0.0
        %1120 = vmatprep.subr.mxu0 0.0
        %1121 = vmatpush2.msra.mxu0 0.0
        %1122 = vmatprep.subr.mxu0 0.0
        %1123 = vmatpush2.msra.mxu0 0.0
        %1124 = vmatprep.subr.mxu0 0.0
        %1125 = vmatpush2.msra.mxu0 0.0
        %1126 = vmatprep.subr.mxu0 0.0
        %1127 = vmatpush2.msra.mxu0 0.0
        %1128 = vmatprep.subr.mxu0 0.0
        %1129 = vmatpush2.msra.mxu0 0.0
        %1130 = vmatprep.subr.mxu0 0.0
        %1131 = vmatpush2.msra.mxu0 0.0
        %1132 = vmatprep.subr.mxu0 0.0
        %1133 = vmatpush2.msra.mxu0 0.0
        %1134 = vmatprep.subr.mxu0 0.0
        %1135 = vmatpush2.msra.mxu0 0.0
        %1136 = vmatprep.subr.mxu0 0.0
        %1137 = vmatpush2.msra.mxu0 0.0
        %1138 = vmatprep.subr.mxu0 0.0
        %1139 = vmatpush2.msra.mxu0 0.0
        %1140 = vmatprep.subr.mxu0 0.0
        %1141 = vmatpush2.msra.mxu0 0.0
        %1142 = vmatprep.subr.mxu0 0.0
        %1143 = vmatpush2.msra.mxu0 0.0
        %1144 = vmatprep.subr.mxu0 0.0
        %1145 = vmatpush2.msra.mxu0 0.0
        %1146 = vmatprep.mubr.f32.mxu0 0.0
        %1147 = vmatmul.mubr.f32.gmra.mxu0 %v1058
        %v1148 = vpop.f32.mrf.mxu0
        %v1149 = vadd.f32 %v1080, %v1148
        %v1150 = vpop.f32.mrf.mxu0
        %1151 = vdwg.mxu0
        %1152 = vst [vmem:[%s322] sm:$0xff] %v1149
        %s1153 = sand.u32 %s164, 1
        %s1154 = scalar_lea.sflag [#allocation4], %s1153
        %s1155 = sand.u32 %s164, 1
        %s1156 = smul.addr %s1155, 8
        %s1157 = scalar_lea.vmem [#allocation11], %s1156
        // Predicated region
        $region65: #{tpu_custom_call.1} parent=43 // pred_check
          %p1158 = pneg %p174
        $region66: #{tpu_custom_call.1} parent=43 // pred_check_branch
          %1160 = sbr.rel (%p1158) target = $region68
        $region67: #{tpu_custom_call.1} parent=43 // pred_region
          %s1162 = ssub.s32 128, 128
          %1163 = vsyncadd %s1154, %s1162
          %s1164 = smul.addr %s25, 128
          %s1165 = scalar_lea.hbm %s6, %s1164
          %s1167 = sshll.u32 %s1157, 4
          %s1168 = int_to_ptr.vmem [resolvable:$true] %s1167
          %1170 = dma.vmem_to_hbm [thread:$0]  %s1168, 128, %s1165, %s1154
        $region68: #{tpu_custom_call.1} parent=43 // pred_fallthru
          _
      $region44: #{tpu_custom_call.1} parent=5 // pred_fallthru
        _
      %p1171 = scmp.le.s32.totalorder 2, %s20
      // Predicated region
      $region69: #{tpu_custom_call.1} parent=5 // pred_check
        %p1172 = pneg %p1171
      $region70: #{tpu_custom_call.1} parent=5 // pred_check_branch
        %1174 = sbr.rel (%p1172) target = $region72
      $region71: #{tpu_custom_call.1} parent=5 // pred_region
        %s1175 = ssub.s32 %s20, 2
        // Predicated region
        $region73: #{tpu_custom_call.1} parent=71 // pred_check
          %p1176 = pneg %p180
        $region74: #{tpu_custom_call.1} parent=71 // pred_check_branch
          %1178 = sbr.rel (%p1176) target = $region76
        $region75: #{tpu_custom_call.1} parent=71 // pred_region
          %s1179 = sand.u32 %s165, 1
          %s1180 = scalar_lea.sflag [#allocation4], %s1179
          %s1181 = sand.u32 %s165, 1
          %s1182 = smul.addr %s1181, 8
          %s1183 = scalar_lea.vmem [#allocation11], %s1182
          %1184 = dma.done %s1180, 128
        $region76: #{tpu_custom_call.1} parent=71 // pred_fallthru
          _
      $region72: #{tpu_custom_call.1} parent=5 // pred_fallthru
        _
    $region6: #{tpu_custom_call.1} parent=1 // loop_footer
      %s24 = sadd.s32 1, %s20
    $region7: #{tpu_custom_call.1} parent=1 // loop_footer_branch
      %19 = sbr.rel target = $region3
    $region8: #{tpu_custom_call.1} parent=1 // loop_exit
      _
    %1185 = vsyncpa [#allocation3], 1
    %s1186 = scalar_lea.sflag [#allocation3], 1
    %1187 = vsyncpa %s1186, 1
    %1188 = vsyncpa [#allocation6], 1
    %1189 = vsyncpa [#allocation9], 1
    %1190 = vsyncpa [#allocation4], 1
    %s1191 = scalar_lea.sflag [#allocation4], 1
    %1192 = vsyncpa %s1191, 1

</llo_original>
